<compile_context>
chip_gen: v6e
topology: v6e:2x2x1
jax: 0.10.0
libtpu: 0.0.40
codegen_flags: <defaults>
</compile_context>

<pallas_src>
import functools

import jax
import jax.numpy as jnp
from jax import lax
from jax.experimental import pallas as pl
from jax.experimental.pallas import tpu as pltpu


def mlp_kernel(x_ref, w1_ref, w2_ref, b2_ref, w3_ref, b3_ref, w4_ref, b4_ref, o_ref):
    # x_ref: (tb, 8) native-layout tile (batch in sublanes, padded features in lanes).
    # Layer 1 contracts the feature dim of W1 (64, 8) with the feature dim of the x
    # tile, producing the lane-dense (64, tb) layout used for the rest of the net.
    # b1 is folded into column 5 of w1 (x column 5 is a constant 1.0), so no bias add.
    h = lax.dot_general(w1_ref[...], x_ref[...],
                        dimension_numbers=(((1,), (1,)), ((), ())),
                        preferred_element_type=jnp.float32)
    h = jnp.maximum(h, 0.0)                                       # (64, tb)

    h = jnp.dot(w2_ref[...], h, preferred_element_type=jnp.float32) + b2_ref[...]
    h = jnp.maximum(h, 0.0)                                       # (32, tb)

    h = jnp.dot(w3_ref[...], h, preferred_element_type=jnp.float32) + b3_ref[...]
    h = jnp.maximum(h, 0.0)                                       # (16, tb)

    out = jnp.dot(w4_ref[...], h, preferred_element_type=jnp.float32) + b4_ref[...]
    o_ref[...] = out.astype(o_ref.dtype)                          # (2, tb), lane-dense


def _round_up(v, m):
    return -(-v // m) * m


def _pick_tb(batch):
    """Batch tile (multiple of 128): one tile for small batches, >=2 tiles otherwise."""
    b128 = _round_up(batch, 128)
    if b128 <= 256:
        return b128                       # whole (small) batch in a single grid step
    half = _round_up(b128 // 2, 128)      # aim for >= 2 tiles (v7x megacore)
    return min(4096, half)                # cap per-tile VMEM / keep pipeline depth


@functools.partial(jax.jit, static_argnames=("tb",))
def laser_processing_net(x, params, *, tb=None):
    """Forward pass of the 4-layer MLP as one gridded Pallas kernel.

    x:      (B, 5) float32
    params: list of (W, b) in PyTorch nn.Linear layout: W (out, in), b (out,)
    returns (B, 2) float32
    """
    (w1, b1), (w2, b2), (w3, b3), (w4, b4) = params
    B = x.shape[0]

    if tb is None:
        tb = _pick_tb(B)
    n_tiles = pl.cdiv(B, tb)
    b_pad = n_tiles * tb

    # One-time layout plumbing (fused by jit): pad x to (b_pad, 8) row-major with a
    # constant 1.0 in column 5 (bias trick); pad W1 to (64, 8) with b1 in column 5.
    xp = jnp.zeros((b_pad, 8), jnp.float32)
    xp = xp.at[:, 5].set(1.0)
    xp = xp.at[:B, :5].set(x.astype(jnp.float32))

    w1p = jnp.zeros((64, 8), jnp.float32)
    w1p = w1p.at[:, :5].set(w1.astype(jnp.float32))
    w1p = w1p.at[:, 5].set(b1.astype(jnp.float32))

    b2c = b2.reshape(32, 1).astype(jnp.float32)
    b3c = b3.reshape(16, 1).astype(jnp.float32)
    b4c = b4.reshape(2, 1).astype(jnp.float32)

    # Weights/biases: full-extent blocks, constant index_map -> VMEM-resident across
    # all batch tiles.
    resident = lambda a: pl.BlockSpec(a.shape, lambda i: (0, 0))

    param_bytes = sum(int(a.size) * 4 for a in (w1p, w2, b2c, w3, b3c, w4, b4c))
    cost = pl.CostEstimate(
        flops=2 * b_pad * (8 * 64 + 64 * 32 + 32 * 16 + 16 * 2),
        transcendentals=0,
        bytes_accessed=b_pad * 8 * 4 + b_pad * 2 * 4 + param_bytes,
    )

    out_t = pl.pallas_call(
        mlp_kernel,
        out_shape=jax.ShapeDtypeStruct((2, b_pad), jnp.float32),
        grid=(n_tiles,),
        in_specs=[
            pl.BlockSpec((tb, 8), lambda i: (i, 0)),   # contiguous native-layout tile
            resident(w1p),
            resident(w2), resident(b2c),
            resident(w3), resident(b3c),
            resident(w4), resident(b4c),
        ],
        out_specs=pl.BlockSpec((2, tb), lambda i: (0, i)),   # lane-dense store
        compiler_params=pltpu.CompilerParams(
            dimension_semantics=("parallel",),               # megacore on v7x
        ),
        cost_estimate=cost,
    )(xp, w1p, w2, b2c, w3, b3c, w4, b4c)

    # Columns >= B hold relu(bias) garbage from the batch padding -- slice them off
    # before transposing back to (B, 2).  The transpose fuses under jit.
    return out_t[:, :B].T


def init_params(key):
    """Deterministic init mimicking PyTorch nn.Linear default (uniform +/- 1/sqrt(fan_in)).

    Weights are kept in PyTorch layout: W (out_features, in_features), b (out_features,).
    """
    sizes = [(5, 64), (64, 32), (32, 16), (16, 2)]
    params = []
    for (fan_in, fan_out) in sizes:
        key, kw, kb = jax.random.split(key, 3)
        bound = 1.0 / jnp.sqrt(fan_in)
        w = jax.random.uniform(kw, (fan_out, fan_in), jnp.float32, -bound, bound)
        b = jax.random.uniform(kb, (fan_out,), jnp.float32, -bound, bound)
        params.append((w, b))
    return params


def reference_forward(x, params):
    h = x
    for i, (w, b) in enumerate(params):
        h = h @ w.T + b
        if i < len(params) - 1:
            h = jnp.maximum(h, 0.0)
    return h


if __name__ == "__main__":
    key = jax.random.PRNGKey(0)
    key, kx = jax.random.split(key)

    B = 8
    x = jax.random.normal(kx, (B, 5), jnp.float32)

    params = init_params(key)

    out = laser_processing_net(x, params)
    out = jax.block_until_ready(out)

    ref = reference_forward(x, params)
    assert out.shape == (B, 2)
    assert jnp.allclose(out, ref, atol=1e-4, rtol=1e-4), "Pallas output mismatch vs reference"

    print("KERNEL_OK")
</pallas_src>

<mosaic_0001>
module attributes {stable_mosaic.version = 11 : i64} {
  func.func @mlp_kernel(%arg0: i32, %arg1: memref<128x8xf32, #tpu.memory_space<vmem>>, %arg2: memref<64x8xf32, #tpu.memory_space<vmem>>, %arg3: memref<32x64xf32, #tpu.memory_space<vmem>>, %arg4: memref<32x1xf32, #tpu.memory_space<vmem>>, %arg5: memref<16x32xf32, #tpu.memory_space<vmem>>, %arg6: memref<16x1xf32, #tpu.memory_space<vmem>>, %arg7: memref<2x16xf32, #tpu.memory_space<vmem>>, %arg8: memref<2x1xf32, #tpu.memory_space<vmem>>, %arg9: memref<2x128xf32, #tpu.memory_space<vmem>>) attributes {dimension_semantics = [#tpu.dimension_semantics<parallel>], iteration_bounds = array<i64: 1>, scalar_prefetch = 0 : i64, scratch_operands = 0 : i64, tpu.core_type = #tpu.core_type<tc>, window_params = [{transform_indices = @transform_0, window_bounds = array<i64: 128, 8>}, {pipeline_mode = #tpu.pipeline_mode<synchronous>, transform_indices = @transform_1, window_bounds = array<i64: 64, 8>}, {pipeline_mode = #tpu.pipeline_mode<synchronous>, transform_indices = @transform_2, window_bounds = array<i64: 32, 64>}, {pipeline_mode = #tpu.pipeline_mode<synchronous>, transform_indices = @transform_3, window_bounds = array<i64: 32, 1>}, {pipeline_mode = #tpu.pipeline_mode<synchronous>, transform_indices = @transform_4, window_bounds = array<i64: 16, 32>}, {pipeline_mode = #tpu.pipeline_mode<synchronous>, transform_indices = @transform_5, window_bounds = array<i64: 16, 1>}, {pipeline_mode = #tpu.pipeline_mode<synchronous>, transform_indices = @transform_6, window_bounds = array<i64: 2, 16>}, {pipeline_mode = #tpu.pipeline_mode<synchronous>, transform_indices = @transform_7, window_bounds = array<i64: 2, 1>}, {transform_indices = @transform_8, window_bounds = array<i64: 2, 128>}]} {
    %c0 = arith.constant 0 : index
    %c0_0 = arith.constant 0 : index
    %0 = vector.load %arg2[%c0, %c0_0] : memref<64x8xf32, #tpu.memory_space<vmem>>, vector<64x8xf32>
    %c0_1 = arith.constant 0 : index
    %c0_2 = arith.constant 0 : index
    %1 = vector.load %arg1[%c0_1, %c0_2] : memref<128x8xf32, #tpu.memory_space<vmem>>, vector<128x8xf32>
    %cst = arith.constant dense<0.000000e+00> : vector<64x128xf32>
    %2 = tpu.matmul %0, %1, %cst {dimension_numbers = #tpu.dot_dimension_numbers<[1], [1], [0], [0], [0, 0, 1, 0], [], []>} : vector<64x8xf32>, vector<128x8xf32>, vector<64x128xf32> -> vector<64x128xf32>
    %cst_3 = arith.constant 0.000000e+00 : f32
    %3 = vector.broadcast %cst_3 : f32 to vector<64x128xf32>
    %4 = arith.maximumf %2, %3 : vector<64x128xf32>
    %c0_4 = arith.constant 0 : index
    %c0_5 = arith.constant 0 : index
    %5 = vector.load %arg3[%c0_4, %c0_5] : memref<32x64xf32, #tpu.memory_space<vmem>>, vector<32x64xf32>
    %cst_6 = arith.constant dense<0.000000e+00> : vector<32x128xf32>
    %6 = tpu.matmul %5, %4, %cst_6 {dimension_numbers = #tpu.dot_dimension_numbers<[1], [0], [0], [1], [0, 0, 1, 1], [], []>} : vector<32x64xf32>, vector<64x128xf32>, vector<32x128xf32> -> vector<32x128xf32>
    %c0_7 = arith.constant 0 : index
    %c0_8 = arith.constant 0 : index
    %7 = vector.load %arg4[%c0_7, %c0_8] : memref<32x1xf32, #tpu.memory_space<vmem>>, vector<32x1xf32>
    %8 = vector.broadcast %7 : vector<32x1xf32> to vector<32x128xf32>
    %9 = arith.addf %6, %8 : vector<32x128xf32>
    %cst_9 = arith.constant 0.000000e+00 : f32
    %10 = vector.broadcast %cst_9 : f32 to vector<32x128xf32>
    %11 = arith.maximumf %9, %10 : vector<32x128xf32>
    %c0_10 = arith.constant 0 : index
    %c0_11 = arith.constant 0 : index
    %12 = vector.load %arg5[%c0_10, %c0_11] : memref<16x32xf32, #tpu.memory_space<vmem>>, vector<16x32xf32>
    %cst_12 = arith.constant dense<0.000000e+00> : vector<16x128xf32>
    %13 = tpu.matmul %12, %11, %cst_12 {dimension_numbers = #tpu.dot_dimension_numbers<[1], [0], [0], [1], [0, 0, 1, 1], [], []>} : vector<16x32xf32>, vector<32x128xf32>, vector<16x128xf32> -> vector<16x128xf32>
    %c0_13 = arith.constant 0 : index
    %c0_14 = arith.constant 0 : index
    %14 = vector.load %arg6[%c0_13, %c0_14] : memref<16x1xf32, #tpu.memory_space<vmem>>, vector<16x1xf32>
    %15 = vector.broadcast %14 : vector<16x1xf32> to vector<16x128xf32>
    %16 = arith.addf %13, %15 : vector<16x128xf32>
    %cst_15 = arith.constant 0.000000e+00 : f32
    %17 = vector.broadcast %cst_15 : f32 to vector<16x128xf32>
    %18 = arith.maximumf %16, %17 : vector<16x128xf32>
    %c0_16 = arith.constant 0 : index
    %c0_17 = arith.constant 0 : index
    %19 = vector.load %arg7[%c0_16, %c0_17] : memref<2x16xf32, #tpu.memory_space<vmem>>, vector<2x16xf32>
    %cst_18 = arith.constant dense<0.000000e+00> : vector<2x128xf32>
    %20 = tpu.matmul %19, %18, %cst_18 {dimension_numbers = #tpu.dot_dimension_numbers<[1], [0], [0], [1], [0, 0, 1, 1], [], []>} : vector<2x16xf32>, vector<16x128xf32>, vector<2x128xf32> -> vector<2x128xf32>
    %c0_19 = arith.constant 0 : index
    %c0_20 = arith.constant 0 : index
    %21 = vector.load %arg8[%c0_19, %c0_20] : memref<2x1xf32, #tpu.memory_space<vmem>>, vector<2x1xf32>
    %22 = vector.broadcast %21 : vector<2x1xf32> to vector<2x128xf32>
    %23 = arith.addf %20, %22 : vector<2x128xf32>
    %c0_21 = arith.constant 0 : index
    %c0_22 = arith.constant 0 : index
    %24 = vector.load %arg9[%c0_21, %c0_22] : memref<2x128xf32, #tpu.memory_space<vmem>>, vector<2x128xf32>
    tpu.vector_store %arg9[%c0_21, %c0_22], %23 {strides = array<i32>} : memref<2x128xf32, #tpu.memory_space<vmem>>, vector<2x128xf32>,
    return
  }
  func.func @transform_0(%arg0: i32) -> (i32, i32) {
    %c0_i32 = arith.constant 0 : i32
    %c0_i32_0 = arith.constant 0 : i32
    return %arg0, %c0_i32 : i32, i32
  }
  func.func @transform_1(%arg0: i32) -> (i32, i32) {
    %c0_i32 = arith.constant 0 : i32
    %c0_i32_0 = arith.constant 0 : i32
    %c0_i32_1 = arith.constant 0 : i32
    return %c0_i32, %c0_i32_0 : i32, i32
  }
  func.func @transform_2(%arg0: i32) -> (i32, i32) {
    %c0_i32 = arith.constant 0 : i32
    %c0_i32_0 = arith.constant 0 : i32
    %c0_i32_1 = arith.constant 0 : i32
    return %c0_i32, %c0_i32_0 : i32, i32
  }
  func.func @transform_3(%arg0: i32) -> (i32, i32) {
    %c0_i32 = arith.constant 0 : i32
    %c0_i32_0 = arith.constant 0 : i32
    %c0_i32_1 = arith.constant 0 : i32
    return %c0_i32, %c0_i32_0 : i32, i32
  }
  func.func @transform_4(%arg0: i32) -> (i32, i32) {
    %c0_i32 = arith.constant 0 : i32
    %c0_i32_0 = arith.constant 0 : i32
    %c0_i32_1 = arith.constant 0 : i32
    return %c0_i32, %c0_i32_0 : i32, i32
  }
  func.func @transform_5(%arg0: i32) -> (i32, i32) {
    %c0_i32 = arith.constant 0 : i32
    %c0_i32_0 = arith.constant 0 : i32
    %c0_i32_1 = arith.constant 0 : i32
    return %c0_i32, %c0_i32_0 : i32, i32
  }
  func.func @transform_6(%arg0: i32) -> (i32, i32) {
    %c0_i32 = arith.constant 0 : i32
    %c0_i32_0 = arith.constant 0 : i32
    %c0_i32_1 = arith.constant 0 : i32
    return %c0_i32, %c0_i32_0 : i32, i32
  }
  func.func @transform_7(%arg0: i32) -> (i32, i32) {
    %c0_i32 = arith.constant 0 : i32
    %c0_i32_0 = arith.constant 0 : i32
    %c0_i32_1 = arith.constant 0 : i32
    return %c0_i32, %c0_i32_0 : i32, i32
  }
  func.func @transform_8(%arg0: i32) -> (i32, i32) {
    %c0_i32 = arith.constant 0 : i32
    %c0_i32_0 = arith.constant 0 : i32
    return %c0_i32, %arg0 : i32, i32
  }
}

</mosaic_0001>

<llo_original>
// kernel: laser_processing_net.1
$region0: #{laser_processing_net.1}
  #allocation0 [shape = 'u32[]', space=smem, size = 0x4, offset = 0x4, fixed_abs, tag = 'smem constant byte address 0x4 - core index']
  #allocation1 [shape = 'u32[144,128]{1,0:T(1,128)}', space=vmem, size = 0x12000, scoped, tag = 'internal scratch']
  %s0 = inlined_call_operand.vmem [shape: f32[128,8], index: 0, kind: input, shape index: {}]
  %s1 = inlined_call_operand.vmem [shape: f32[64,8], index: 1, kind: input, shape index: {}]
  %s2 = inlined_call_operand.vmem [shape: f32[32,64], index: 2, kind: input, shape index: {}]
  %s3 = inlined_call_operand.vmem [shape: f32[32,1], index: 3, kind: input, shape index: {}]
  %s4 = inlined_call_operand.vmem [shape: f32[16,32], index: 4, kind: input, shape index: {}]
  %s5 = inlined_call_operand.vmem [shape: f32[16,1], index: 5, kind: input, shape index: {}]
  %s6 = inlined_call_operand.vmem [shape: f32[2,16], index: 6, kind: input, shape index: {}]
  %s7 = inlined_call_operand.vmem [shape: f32[2,1], index: 7, kind: input, shape index: {}]
  %s8 = inlined_call_operand.vmem [shape: f32[2,128], index: 8, kind: output, shape index: {}]
  %s9 = sld [smem:[#allocation0]]
  $region42: #{laser_processing_net.1} parent=0
    _
  %s11 = ssub.s32 1, %s9
  %s12 = scalar_select 0, %s11, %s9
  // Predicated region
  $region2: #{laser_processing_net.1} parent=0 // pred_check
    _
  $region3: #{laser_processing_net.1} parent=0 // pred_check_branch
    %14 = sbr.rel (0) target = $region5
  $region4: #{laser_processing_net.1} parent=0 // pred_region
    _
  $region5: #{laser_processing_net.1} parent=0 // pred_fallthru
    _
  // Predicated region
  $region6: #{laser_processing_net.1} parent=0 // pred_check
    _
  $region7: #{laser_processing_net.1} parent=0 // pred_check_branch
    %16 = sbr.rel (0) target = $region9
  $region8: #{laser_processing_net.1} parent=0 // pred_region
    _
  $region9: #{laser_processing_net.1} parent=0 // pred_fallthru
    _
  // Predicated region
  $region10: #{laser_processing_net.1} parent=0 // pred_check
    _
  $region11: #{laser_processing_net.1} parent=0 // pred_check_branch
    %18 = sbr.rel (0) target = $region13
  $region12: #{laser_processing_net.1} parent=0 // pred_region
    _
  $region13: #{laser_processing_net.1} parent=0 // pred_fallthru
    _
  // Predicated region
  $region14: #{laser_processing_net.1} parent=0 // pred_check
    _
  $region15: #{laser_processing_net.1} parent=0 // pred_check_branch
    %20 = sbr.rel (0) target = $region17
  $region16: #{laser_processing_net.1} parent=0 // pred_region
    _
  $region17: #{laser_processing_net.1} parent=0 // pred_fallthru
    _
  // Predicated region
  $region18: #{laser_processing_net.1} parent=0 // pred_check
    _
  $region19: #{laser_processing_net.1} parent=0 // pred_check_branch
    %22 = sbr.rel (0) target = $region21
  $region20: #{laser_processing_net.1} parent=0 // pred_region
    _
  $region21: #{laser_processing_net.1} parent=0 // pred_fallthru
    _
  // Predicated region
  $region22: #{laser_processing_net.1} parent=0 // pred_check
    _
  $region23: #{laser_processing_net.1} parent=0 // pred_check_branch
    %24 = sbr.rel (0) target = $region25
  $region24: #{laser_processing_net.1} parent=0 // pred_region
    _
  $region25: #{laser_processing_net.1} parent=0 // pred_fallthru
    _
  // Predicated region
  $region26: #{laser_processing_net.1} parent=0 // pred_check
    _
  $region27: #{laser_processing_net.1} parent=0 // pred_check_branch
    %26 = sbr.rel (0) target = $region29
  $region28: #{laser_processing_net.1} parent=0 // pred_region
    _
  $region29: #{laser_processing_net.1} parent=0 // pred_fallthru
    _
  // Predicated region
  $region30: #{laser_processing_net.1} parent=0 // pred_check
    _
  $region31: #{laser_processing_net.1} parent=0 // pred_check_branch
    %28 = sbr.rel (0) target = $region33
  $region32: #{laser_processing_net.1} parent=0 // pred_region
    _
  $region33: #{laser_processing_net.1} parent=0 // pred_fallthru
    _
  %v29 = vld [vmem:[%s1] sm:$0xff]
  %v30 = vld [vmem:[%s1 + $0x8] sm:$0xff]
  %v31 = vld [vmem:[%s1 + $0x10] sm:$0xff]
  %v32 = vld [vmem:[%s1 + $0x18] sm:$0xff]
  %v33 = vld [vmem:[%s1 + $0x20] sm:$0xff]
  %v34 = vld [vmem:[%s1 + $0x28] sm:$0xff]
  %v35 = vld [vmem:[%s1 + $0x30] sm:$0xff]
  %v36 = vld [vmem:[%s1 + $0x38] sm:$0xff]
  %v37 = vld [vmem:[%s0] sm:$0xff]
  %v38 = vld [vmem:[%s0 + $0x8] sm:$0xff]
  %v39 = vld [vmem:[%s0 + $0x10] sm:$0xff]
  %v40 = vld [vmem:[%s0 + $0x18] sm:$0xff]
  %v41 = vld [vmem:[%s0 + $0x20] sm:$0xff]
  %v42 = vld [vmem:[%s0 + $0x28] sm:$0xff]
  %v43 = vld [vmem:[%s0 + $0x30] sm:$0xff]
  %v44 = vld [vmem:[%s0 + $0x38] sm:$0xff]
  %v45 = vld [vmem:[%s0 + $0x40] sm:$0xff]
  %v46 = vld [vmem:[%s0 + $0x48] sm:$0xff]
  %v47 = vld [vmem:[%s0 + $0x50] sm:$0xff]
  %v48 = vld [vmem:[%s0 + $0x58] sm:$0xff]
  %v49 = vld [vmem:[%s0 + $0x60] sm:$0xff]
  %v50 = vld [vmem:[%s0 + $0x68] sm:$0xff]
  %v51 = vld [vmem:[%s0 + $0x70] sm:$0xff]
  %v52 = vld [vmem:[%s0 + $0x78] sm:$0xff]
  %vm53 = vcmask 64512
  %v55 = vsel %vm53, %v29, 0
  %v58 = vsel %vm53, %v30, 0
  %v61 = vsel %vm53, %v31, 0
  %v64 = vsel %vm53, %v32, 0
  %v67 = vsel %vm53, %v33, 0
  %v70 = vsel %vm53, %v34, 0
  %v73 = vsel %vm53, %v35, 0
  %v76 = vsel %vm53, %v36, 0
  %v79 = vsel %vm53, %v37, 0
  %v82 = vsel %vm53, %v38, 0
  %v85 = vsel %vm53, %v39, 0
  %v88 = vsel %vm53, %v40, 0
  %v91 = vsel %vm53, %v41, 0
  %v94 = vsel %vm53, %v42, 0
  %v97 = vsel %vm53, %v43, 0
  %v100 = vsel %vm53, %v44, 0
  %v103 = vsel %vm53, %v45, 0
  %v106 = vsel %vm53, %v46, 0
  %v109 = vsel %vm53, %v47, 0
  %v112 = vsel %vm53, %v48, 0
  %v115 = vsel %vm53, %v49, 0
  %v118 = vsel %vm53, %v50, 0
  %v121 = vsel %vm53, %v51, 0
  %v124 = vsel %vm53, %v52, 0
  %126 = vmatprep.subr.mxu0 0.0
  %127 = vmatpush1.xpose.msra.mxu0 %v124
  %128 = vmatprep.subr.mxu0 0.0
  %129 = vmatpush1.xpose.msra.mxu0 %v121
  %130 = vmatprep.subr.mxu0 0.0
  %131 = vmatpush1.xpose.msra.mxu0 %v118
  %132 = vmatprep.subr.mxu0 0.0
  %133 = vmatpush1.xpose.msra.mxu0 %v115
  %134 = vmatprep.subr.mxu0 0.0
  %135 = vmatpush1.xpose.msra.mxu0 %v112
  %136 = vmatprep.subr.mxu0 0.0
  %137 = vmatpush1.xpose.msra.mxu0 %v109
  %138 = vmatprep.subr.mxu0 0.0
  %139 = vmatpush1.xpose.msra.mxu0 %v106
  %140 = vmatprep.subr.mxu0 0.0
  %141 = vmatpush1.xpose.msra.mxu0 %v103
  %142 = vmatprep.subr.mxu0 0.0
  %143 = vmatpush1.xpose.msra.mxu0 %v100
  %144 = vmatprep.subr.mxu0 0.0
  %145 = vmatpush1.xpose.msra.mxu0 %v97
  %146 = vmatprep.subr.mxu0 0.0
  %147 = vmatpush1.xpose.msra.mxu0 %v94
  %148 = vmatprep.subr.mxu0 0.0
  %149 = vmatpush1.xpose.msra.mxu0 %v91
  %150 = vmatprep.subr.mxu0 0.0
  %151 = vmatpush1.xpose.msra.mxu0 %v88
  %152 = vmatprep.subr.mxu0 0.0
  %153 = vmatpush1.xpose.msra.mxu0 %v85
  %154 = vmatprep.subr.mxu0 0.0
  %155 = vmatpush1.xpose.msra.mxu0 %v82
  %156 = vmatprep.subr.mxu0 0.0
  %157 = vmatpush1.xpose.msra.mxu0 %v79
  %158 = vmatprep.subr.mxu0 0.0
  %159 = vmatpush2.xpose.msra.mxu0 0.0
  %160 = vmatprep.subr.mxu0 0.0
  %161 = vmatpush2.xpose.msra.mxu0 0.0
  %162 = vmatprep.subr.mxu0 0.0
  %163 = vmatpush2.xpose.msra.mxu0 0.0
  %164 = vmatprep.subr.mxu0 0.0
  %165 = vmatpush2.xpose.msra.mxu0 0.0
  %166 = vmatprep.subr.mxu0 0.0
  %167 = vmatpush2.xpose.msra.mxu0 0.0
  %168 = vmatprep.subr.mxu0 0.0
  %169 = vmatpush2.xpose.msra.mxu0 0.0
  %170 = vmatprep.subr.mxu0 0.0
  %171 = vmatpush2.xpose.msra.mxu0 0.0
  %172 = vmatprep.subr.mxu0 0.0
  %173 = vmatpush2.xpose.msra.mxu0 0.0
  %174 = vmatprep.subr.mxu0 0.0
  %175 = vmatpush2.xpose.msra.mxu0 0.0
  %176 = vmatprep.subr.mxu0 0.0
  %177 = vmatpush2.xpose.msra.mxu0 0.0
  %178 = vmatprep.subr.mxu0 0.0
  %179 = vmatpush2.xpose.msra.mxu0 0.0
  %180 = vmatprep.subr.mxu0 0.0
  %181 = vmatpush2.xpose.msra.mxu0 0.0
  %182 = vmatprep.subr.mxu0 0.0
  %183 = vmatpush2.xpose.msra.mxu0 0.0
  %184 = vmatprep.subr.mxu0 0.0
  %185 = vmatpush2.xpose.msra.mxu0 0.0
  %186 = vmatprep.subr.mxu0 0.0
  %187 = vmatpush2.xpose.msra.mxu0 0.0
  %188 = vmatprep.subr.mxu0 0.0
  %189 = vmatpush2.xpose.msra.mxu0 0.0
  %190 = vmatprep.mubr.f32.mxu0 0.0
  %191 = vmatmul.mubr.f32.gmra.mxu0 %v55
  %v192 = vpop.f32.mrf.mxu0
  %v193 = vadd.f32 0.0, %v192
  %v194 = vpop.f32.mrf.mxu0
  %195 = vmatprep.mubr.f32.mxu0 0.0
  %196 = vmatmul.mubr.f32.gmra.mxu0 %v58
  %v197 = vpop.f32.mrf.mxu0
  %v198 = vadd.f32 0.0, %v197
  %v199 = vpop.f32.mrf.mxu0
  %200 = vmatprep.mubr.f32.mxu0 0.0
  %201 = vmatmul.mubr.f32.gmra.mxu0 %v61
  %v202 = vpop.f32.mrf.mxu0
  %v203 = vadd.f32 0.0, %v202
  %v204 = vpop.f32.mrf.mxu0
  %205 = vmatprep.mubr.f32.mxu0 0.0
  %206 = vmatmul.mubr.f32.gmra.mxu0 %v64
  %v207 = vpop.f32.mrf.mxu0
  %v208 = vadd.f32 0.0, %v207
  %v209 = vpop.f32.mrf.mxu0
  %210 = vmatprep.mubr.f32.mxu0 0.0
  %211 = vmatmul.mubr.f32.gmra.mxu0 %v67
  %v212 = vpop.f32.mrf.mxu0
  %v213 = vadd.f32 0.0, %v212
  %v214 = vpop.f32.mrf.mxu0
  %215 = vmatprep.mubr.f32.mxu0 0.0
  %216 = vmatmul.mubr.f32.gmra.mxu0 %v70
  %v217 = vpop.f32.mrf.mxu0
  %v218 = vadd.f32 0.0, %v217
  %v219 = vpop.f32.mrf.mxu0
  %220 = vmatprep.mubr.f32.mxu0 0.0
  %221 = vmatmul.mubr.f32.gmra.mxu0 %v73
  %v222 = vpop.f32.mrf.mxu0
  %v223 = vadd.f32 0.0, %v222
  %v224 = vpop.f32.mrf.mxu0
  %225 = vmatprep.mubr.f32.mxu0 0.0
  %226 = vmatmul.mubr.f32.gmra.mxu0 %v76
  %v227 = vpop.f32.mrf.mxu0
  %v228 = vadd.f32 0.0, %v227
  %v229 = vpop.f32.mrf.mxu0
  %230 = vdwg.mxu0
  %v231 = vmax.f32 %v193, 0.0
  %v232 = vmax.f32 %v198, 0.0
  %v233 = vmax.f32 %v203, 0.0
  %v234 = vmax.f32 %v208, 0.0
  %v235 = vmax.f32 %v213, 0.0
  %v236 = vmax.f32 %v218, 0.0
  %v237 = vmax.f32 %v223, 0.0
  %v238 = vmax.f32 %v228, 0.0
  %v239 = vld [vmem:[%s2] sm:$0xff]
  %v240 = vld [vmem:[%s2 + $0x8] sm:$0xff]
  %v241 = vld [vmem:[%s2 + $0x10] sm:$0xff]
  %v242 = vld [vmem:[%s2 + $0x18] sm:$0xff]
  %v243 = vld [vmem:[%s3] sm:$0xff]
  %v244 = vld [vmem:[%s3 + $0x8] sm:$0xff]
  %v245 = vld [vmem:[%s3 + $0x10] sm:$0xff]
  %v246 = vld [vmem:[%s3 + $0x18] sm:$0xff]
  %248 = vset.pattern.permute.xlu0 0
  %249 = vperm.xlu0 %248, %v243
  %v250 = vpop.permute.xlu0 %249
  %253 = vset.pattern.permute.xlu0 0
  %254 = vperm.xlu0 %253, %v244
  %v255 = vpop.permute.xlu0 %254
  %258 = vset.pattern.permute.xlu0 0
  %259 = vperm.xlu0 %258, %v245
  %v260 = vpop.permute.xlu0 %259
  %263 = vset.pattern.permute.xlu0 0
  %264 = vperm.xlu0 %263, %v246
  %v265 = vpop.permute.xlu0 %264
  %vm267 = vcmask 523264
  %v269 = vsel %vm267, %v239, 0
  %v272 = vsel %vm267, %v240, 0
  %v275 = vsel %vm267, %v241, 0
  %v278 = vsel %vm267, %v242, 0
  %280 = vmatprep.subr.mxu0 0.0
  %281 = vmatpush1.msra.mxu0 0.0
  %282 = vmatprep.subr.mxu0 0.0
  %283 = vmatpush1.msra.mxu0 0.0
  %284 = vmatprep.subr.mxu0 0.0
  %285 = vmatpush1.msra.mxu0 0.0
  %286 = vmatprep.subr.mxu0 0.0
  %287 = vmatpush1.msra.mxu0 0.0
  %288 = vmatprep.subr.mxu0 0.0
  %289 = vmatpush1.msra.mxu0 0.0
  %290 = vmatprep.subr.mxu0 0.0
  %291 = vmatpush1.msra.mxu0 0.0
  %292 = vmatprep.subr.mxu0 0.0
  %293 = vmatpush1.msra.mxu0 0.0
  %294 = vmatprep.subr.mxu0 0.0
  %295 = vmatpush1.msra.mxu0 0.0
  %296 = vmatprep.subr.mxu0 0.0
  %297 = vmatpush1.msra.mxu0 %v238
  %298 = vmatprep.subr.mxu0 0.0
  %299 = vmatpush1.msra.mxu0 %v237
  %300 = vmatprep.subr.mxu0 0.0
  %301 = vmatpush1.msra.mxu0 %v236
  %302 = vmatprep.subr.mxu0 0.0
  %303 = vmatpush1.msra.mxu0 %v235
  %304 = vmatprep.subr.mxu0 0.0
  %305 = vmatpush1.msra.mxu0 %v234
  %306 = vmatprep.subr.mxu0 0.0
  %307 = vmatpush1.msra.mxu0 %v233
  %308 = vmatprep.subr.mxu0 0.0
  %309 = vmatpush1.msra.mxu0 %v232
  %310 = vmatprep.subr.mxu0 0.0
  %311 = vmatpush1.msra.mxu0 %v231
  %312 = vmatprep.subr.mxu0 0.0
  %313 = vmatpush2.msra.mxu0 0.0
  %314 = vmatprep.subr.mxu0 0.0
  %315 = vmatpush2.msra.mxu0 0.0
  %316 = vmatprep.subr.mxu0 0.0
  %317 = vmatpush2.msra.mxu0 0.0
  %318 = vmatprep.subr.mxu0 0.0
  %319 = vmatpush2.msra.mxu0 0.0
  %320 = vmatprep.subr.mxu0 0.0
  %321 = vmatpush2.msra.mxu0 0.0
  %322 = vmatprep.subr.mxu0 0.0
  %323 = vmatpush2.msra.mxu0 0.0
  %324 = vmatprep.subr.mxu0 0.0
  %325 = vmatpush2.msra.mxu0 0.0
  %326 = vmatprep.subr.mxu0 0.0
  %327 = vmatpush2.msra.mxu0 0.0
  %328 = vmatprep.subr.mxu0 0.0
  %329 = vmatpush2.msra.mxu0 0.0
  %330 = vmatprep.subr.mxu0 0.0
  %331 = vmatpush2.msra.mxu0 0.0
  %332 = vmatprep.subr.mxu0 0.0
  %333 = vmatpush2.msra.mxu0 0.0
  %334 = vmatprep.subr.mxu0 0.0
  %335 = vmatpush2.msra.mxu0 0.0
  %336 = vmatprep.subr.mxu0 0.0
  %337 = vmatpush2.msra.mxu0 0.0
  %338 = vmatprep.subr.mxu0 0.0
  %339 = vmatpush2.msra.mxu0 0.0
  %340 = vmatprep.subr.mxu0 0.0
  %341 = vmatpush2.msra.mxu0 0.0
  %342 = vmatprep.subr.mxu0 0.0
  %343 = vmatpush2.msra.mxu0 0.0
  %344 = vmatprep.mubr.f32.mxu0 0.0
  %345 = vmatmul.mubr.f32.gmra.mxu0 %v269
  %v346 = vpop.f32.mrf.mxu0
  %v347 = vadd.f32 %v250, %v346
  %v348 = vpop.f32.mrf.mxu0
  %349 = vmatprep.mubr.f32.mxu0 0.0
  %350 = vmatmul.mubr.f32.gmra.mxu0 %v272
  %v351 = vpop.f32.mrf.mxu0
  %v352 = vadd.f32 %v255, %v351
  %v353 = vpop.f32.mrf.mxu0
  %354 = vmatprep.mubr.f32.mxu0 0.0
  %355 = vmatmul.mubr.f32.gmra.mxu0 %v275
  %v356 = vpop.f32.mrf.mxu0
  %v357 = vadd.f32 %v260, %v356
  %v358 = vpop.f32.mrf.mxu0
  %359 = vmatprep.mubr.f32.mxu0 0.0
  %360 = vmatmul.mubr.f32.gmra.mxu0 %v278
  %v361 = vpop.f32.mrf.mxu0
  %v362 = vadd.f32 %v265, %v361
  %v363 = vpop.f32.mrf.mxu0
  %364 = vdwg.mxu0
  %v365 = vmax.f32 %v347, 0.0
  %v366 = vmax.f32 %v352, 0.0
  %v367 = vmax.f32 %v357, 0.0
  %v368 = vmax.f32 %v362, 0.0
  %v369 = vld [vmem:[%s4] sm:$0xff]
  %v370 = vld [vmem:[%s4 + $0x8] sm:$0xff]
  %v371 = vld [vmem:[%s5] sm:$0xff]
  %v372 = vld [vmem:[%s5 + $0x8] sm:$0xff]
  %374 = vset.pattern.permute.xlu0 0
  %375 = vperm.xlu0 %374, %v371
  %v376 = vpop.permute.xlu0 %375
  %379 = vset.pattern.permute.xlu0 0
  %380 = vperm.xlu0 %379, %v372
  %v381 = vpop.permute.xlu0 %380
  %vm383 = vcmask 261120
  %v385 = vsel %vm383, %v369, 0
  %v388 = vsel %vm383, %v370, 0
  %390 = vmatprep.subr.mxu0 0.0
  %391 = vmatpush1.msra.mxu0 0.0
  %392 = vmatprep.subr.mxu0 0.0
  %393 = vmatpush1.msra.mxu0 0.0
  %394 = vmatprep.subr.mxu0 0.0
  %395 = vmatpush1.msra.mxu0 0.0
  %396 = vmatprep.subr.mxu0 0.0
  %397 = vmatpush1.msra.mxu0 0.0
  %398 = vmatprep.subr.mxu0 0.0
  %399 = vmatpush1.msra.mxu0 0.0
  %400 = vmatprep.subr.mxu0 0.0
  %401 = vmatpush1.msra.mxu0 0.0
  %402 = vmatprep.subr.mxu0 0.0
  %403 = vmatpush1.msra.mxu0 0.0
  %404 = vmatprep.subr.mxu0 0.0
  %405 = vmatpush1.msra.mxu0 0.0
  %406 = vmatprep.subr.mxu0 0.0
  %407 = vmatpush1.msra.mxu0 0.0
  %408 = vmatprep.subr.mxu0 0.0
  %409 = vmatpush1.msra.mxu0 0.0
  %410 = vmatprep.subr.mxu0 0.0
  %411 = vmatpush1.msra.mxu0 0.0
  %412 = vmatprep.subr.mxu0 0.0
  %413 = vmatpush1.msra.mxu0 0.0
  %414 = vmatprep.subr.mxu0 0.0
  %415 = vmatpush1.msra.mxu0 %v368
  %416 = vmatprep.subr.mxu0 0.0
  %417 = vmatpush1.msra.mxu0 %v367
  %418 = vmatprep.subr.mxu0 0.0
  %419 = vmatpush1.msra.mxu0 %v366
  %420 = vmatprep.subr.mxu0 0.0
  %421 = vmatpush1.msra.mxu0 %v365
  %422 = vmatprep.subr.mxu0 0.0
  %423 = vmatpush2.msra.mxu0 0.0
  %424 = vmatprep.subr.mxu0 0.0
  %425 = vmatpush2.msra.mxu0 0.0
  %426 = vmatprep.subr.mxu0 0.0
  %427 = vmatpush2.msra.mxu0 0.0
  %428 = vmatprep.subr.mxu0 0.0
  %429 = vmatpush2.msra.mxu0 0.0
  %430 = vmatprep.subr.mxu0 0.0
  %431 = vmatpush2.msra.mxu0 0.0
  %432 = vmatprep.subr.mxu0 0.0
  %433 = vmatpush2.msra.mxu0 0.0
  %434 = vmatprep.subr.mxu0 0.0
  %435 = vmatpush2.msra.mxu0 0.0
  %436 = vmatprep.subr.mxu0 0.0
  %437 = vmatpush2.msra.mxu0 0.0
  %438 = vmatprep.subr.mxu0 0.0
  %439 = vmatpush2.msra.mxu0 0.0
  %440 = vmatprep.subr.mxu0 0.0
  %441 = vmatpush2.msra.mxu0 0.0
  %442 = vmatprep.subr.mxu0 0.0
  %443 = vmatpush2.msra.mxu0 0.0
  %444 = vmatprep.subr.mxu0 0.0
  %445 = vmatpush2.msra.mxu0 0.0
  %446 = vmatprep.subr.mxu0 0.0
  %447 = vmatpush2.msra.mxu0 0.0
  %448 = vmatprep.subr.mxu0 0.0
  %449 = vmatpush2.msra.mxu0 0.0
  %450 = vmatprep.subr.mxu0 0.0
  %451 = vmatpush2.msra.mxu0 0.0
  %452 = vmatprep.subr.mxu0 0.0
  %453 = vmatpush2.msra.mxu0 0.0
  %454 = vmatprep.mubr.f32.mxu0 0.0
  %455 = vmatmul.mubr.f32.gmra.mxu0 %v385
  %v456 = vpop.f32.mrf.mxu0
  %v457 = vadd.f32 %v376, %v456
  %v458 = vpop.f32.mrf.mxu0
  %459 = vmatprep.mubr.f32.mxu0 0.0
  %460 = vmatmul.mubr.f32.gmra.mxu0 %v388
  %v461 = vpop.f32.mrf.mxu0
  %v462 = vadd.f32 %v381, %v461
  %v463 = vpop.f32.mrf.mxu0
  %464 = vdwg.mxu0
  %v465 = vmax.f32 %v457, 0.0
  %v466 = vmax.f32 %v462, 0.0
  %v467 = vld [vmem:[%s6] sm:$0x3]
  %v468 = vld [vmem:[%s7] sm:$0x3]
  %470 = vset.pattern.permute.xlu0 0
  %471 = vperm.xlu0 %470, %v468
  %v472 = vpop.permute.xlu0 %471
  %vm474 = vcmask 130048
  %v476 = vsel %vm474, %v467, 0
  %478 = vmatprep.subr.mxu0 0.0
  %479 = vmatpush1.msra.mxu0 0.0
  %480 = vmatprep.subr.mxu0 0.0
  %481 = vmatpush1.msra.mxu0 0.0
  %482 = vmatprep.subr.mxu0 0.0
  %483 = vmatpush1.msra.mxu0 0.0
  %484 = vmatprep.subr.mxu0 0.0
  %485 = vmatpush1.msra.mxu0 0.0
  %486 = vmatprep.subr.mxu0 0.0
  %487 = vmatpush1.msra.mxu0 0.0
  %488 = vmatprep.subr.mxu0 0.0
  %489 = vmatpush1.msra.mxu0 0.0
  %490 = vmatprep.subr.mxu0 0.0
  %491 = vmatpush1.msra.mxu0 0.0
  %492 = vmatprep.subr.mxu0 0.0
  %493 = vmatpush1.msra.mxu0 0.0
  %494 = vmatprep.subr.mxu0 0.0
  %495 = vmatpush1.msra.mxu0 0.0
  %496 = vmatprep.subr.mxu0 0.0
  %497 = vmatpush1.msra.mxu0 0.0
  %498 = vmatprep.subr.mxu0 0.0
  %499 = vmatpush1.msra.mxu0 0.0
  %500 = vmatprep.subr.mxu0 0.0
  %501 = vmatpush1.msra.mxu0 0.0
  %502 = vmatprep.subr.mxu0 0.0
  %503 = vmatpush1.msra.mxu0 0.0
  %504 = vmatprep.subr.mxu0 0.0
  %505 = vmatpush1.msra.mxu0 0.0
  %506 = vmatprep.subr.mxu0 0.0
  %507 = vmatpush1.msra.mxu0 %v466
  %508 = vmatprep.subr.mxu0 0.0
  %509 = vmatpush1.msra.mxu0 %v465
  %510 = vmatprep.subr.mxu0 0.0
  %511 = vmatpush2.msra.mxu0 0.0
  %512 = vmatprep.subr.mxu0 0.0
  %513 = vmatpush2.msra.mxu0 0.0
  %514 = vmatprep.subr.mxu0 0.0
  %515 = vmatpush2.msra.mxu0 0.0
  %516 = vmatprep.subr.mxu0 0.0
  %517 = vmatpush2.msra.mxu0 0.0
  %518 = vmatprep.subr.mxu0 0.0
  %519 = vmatpush2.msra.mxu0 0.0
  %520 = vmatprep.subr.mxu0 0.0
  %521 = vmatpush2.msra.mxu0 0.0
  %522 = vmatprep.subr.mxu0 0.0
  %523 = vmatpush2.msra.mxu0 0.0
  %524 = vmatprep.subr.mxu0 0.0
  %525 = vmatpush2.msra.mxu0 0.0
  %526 = vmatprep.subr.mxu0 0.0
  %527 = vmatpush2.msra.mxu0 0.0
  %528 = vmatprep.subr.mxu0 0.0
  %529 = vmatpush2.msra.mxu0 0.0
  %530 = vmatprep.subr.mxu0 0.0
  %531 = vmatpush2.msra.mxu0 0.0
  %532 = vmatprep.subr.mxu0 0.0
  %533 = vmatpush2.msra.mxu0 0.0
  %534 = vmatprep.subr.mxu0 0.0
  %535 = vmatpush2.msra.mxu0 0.0
  %536 = vmatprep.subr.mxu0 0.0
  %537 = vmatpush2.msra.mxu0 0.0
  %538 = vmatprep.subr.mxu0 0.0
  %539 = vmatpush2.msra.mxu0 0.0
  %540 = vmatprep.subr.mxu0 0.0
  %541 = vmatpush2.msra.mxu0 0.0
  %542 = vmatprep.mubr.f32.mxu0 0.0
  %543 = vmatmul.mubr.f32.gmra.mxu0 %v476
  %v544 = vpop.f32.mrf.mxu0
  %v545 = vadd.f32 %v472, %v544
  %v546 = vpop.f32.mrf.mxu0
  %547 = vdwg.mxu0
  %548 = vst [vmem:[%s8] sm:$0x3] %v545
  // Predicated region
  $region34: #{laser_processing_net.1} parent=0 // pred_check
    _
  $region35: #{laser_processing_net.1} parent=0 // pred_check_branch
    %550 = sbr.rel (0) target = $region37
  $region36: #{laser_processing_net.1} parent=0 // pred_region
    _
  $region37: #{laser_processing_net.1} parent=0 // pred_fallthru
    _
  // Predicated region
  $region38: #{laser_processing_net.1} parent=0 // pred_check
    _
  $region39: #{laser_processing_net.1} parent=0 // pred_check_branch
    %552 = sbr.rel (0) target = $region41
  $region40: #{laser_processing_net.1} parent=0 // pred_region
    _
  $region41: #{laser_processing_net.1} parent=0 // pred_fallthru
    _

</llo_original>
